<compile_context>
chip_gen: v7x
topology: tpu7x:2x2x1
jax: 0.10.0
libtpu: 0.0.40
codegen_flags: <defaults>
</compile_context>

<pallas_src>
import functools
import math

import jax
import jax.numpy as jnp
from jax.experimental import pallas as pl
from jax.experimental.pallas import tpu as pltpu


def _label_smoothing_kernel(y_ref, x_ref, part_ref, *, ls, vocab_size, pad, n_rows):
    # y_ref    : (TM, 1)   int32 targets (padded with `pad` past the true row count)
    # x_ref    : (TM, V)   logits, native dtype; last tile's tail rows may be garbage
    # part_ref : (1, 8, 128) f32; this tile's partial loss broadcast into the block
    tile_m = x_ref.shape[0]

    x = x_ref[...].astype(jnp.float32)                       # (TM, V)
    y = y_ref[...]                                           # (TM, 1)

    # Numerically stable log-sum-exp over the vocab (lane) axis.
    m = jnp.max(x, axis=-1, keepdims=True)                   # (TM, 1)
    lse = jnp.log(jnp.sum(jnp.exp(x - m), axis=-1, keepdims=True)) + m

    # Smoothed-target weights (never materialized in HBM):
    #   t_j = 1-ls at j == y,   0 at j == pad,   fill = ls/(V-2) elsewhere.
    # One fused masked-weighted lane reduction replaces sum(x), the x[y] gather and the
    # x[:, pad] slice of the previous version.
    fill = ls / (vocab_size - 2)
    col = jax.lax.broadcasted_iota(jnp.int32, x.shape, 1)    # (TM, V)
    weighted = jnp.where(col == y, (1.0 - ls) * x,
                         jnp.where(col == pad, 0.0, fill * x))
    t_dot_x = jnp.sum(weighted, axis=-1, keepdims=True)      # (TM, 1) = sum_j t_j * x_j

    # H = sum_j t_j * log(t_j) is a compile-time constant for every non-pad row.
    h_const = 0.0
    if ls < 1.0:
        h_const += (1.0 - ls) * math.log(1.0 - ls)
    if ls > 0.0:
        h_const += ls * math.log(fill)

    # KL(t || softmax(x)) summed over the row:  H - (t.x - lse)   (since sum_j t_j == 1)
    row_loss = jnp.float32(h_const) - (t_dot_x - lse)        # (TM, 1)

    # SELECT away pad-target rows and out-of-bounds tail rows of the last tile.  The tail
    # logits are unspecified and may yield Inf/NaN, so a select (not a 0/1 multiply) is
    # required to keep them out of the sum.
    grow = pl.program_id(0) * tile_m + jax.lax.broadcasted_iota(jnp.int32, y.shape, 0)
    valid = (y != pad) & (grow < n_rows)
    row_loss = jnp.where(valid, row_loss, jnp.float32(0.0))

    partial = jnp.sum(row_loss)                              # scalar

    # Lane-dense output block; broadcast the scalar (wrapper reads [:, 0, 0]).
    part_ref[...] = jnp.full(part_ref.shape, partial, dtype=jnp.float32)


def _default_block_and_vmem():
    """Generation-aware defaults: larger tiles on v5e/v6e (128 MiB VMEM), tighter on v7x (64 MiB)."""
    vmem_bytes = 64 * 1024 * 1024
    try:
        vmem_bytes = pltpu.get_tpu_info().vmem_capacity_bytes
    except Exception:
        pass  # older jax / CPU tracing: fall back to the conservative (v7x) choice
    if vmem_bytes >= 96 * 1024 * 1024:           # v5e / v6e: 128 MiB physical VMEM
        return 16 * 1024 * 1024, 64 * 1024 * 1024
    return 8 * 1024 * 1024, 48 * 1024 * 1024     # v7x: 64 MiB physical VMEM


def label_smoothing_loss(out, y, *, ls, tgt_vocab_size, pad,
                         block_bytes=None, vmem_limit_bytes=None):
    """out: (..., V) float logits (any float dtype), y: (...,) int targets -> scalar f32 loss."""
    if block_bytes is None or vmem_limit_bytes is None:
        dflt_block, dflt_vmem = _default_block_and_vmem()
        block_bytes = dflt_block if block_bytes is None else block_bytes
        vmem_limit_bytes = dflt_vmem if vmem_limit_bytes is None else vmem_limit_bytes

    V = tgt_vocab_size
    x = out.reshape(-1, V)                      # native dtype; no f32 copy, no padding
    yv = y.reshape(-1).astype(jnp.int32)
    N = x.shape[0]

    itemsize = jnp.dtype(x.dtype).itemsize
    sublane = {4: 8, 2: 16, 1: 32}.get(itemsize, 8)

    # Rows per tile, budgeted on the f32 *working* set (~block_bytes) so the in-kernel f32
    # temporaries stay bounded even for bf16 inputs, then aligned to the sublane count.
    tile_m = max(sublane, (block_bytes // (V * 4)) // sublane * sublane)
    n_aligned = -(-N // sublane) * sublane
    tile_m = min(tile_m, n_aligned)
    # Keep at least two tiles when the data allows it so dimension_semantics=("parallel",)
    # can spread the grid over both v7x TensorCores.
    if tile_m >= n_aligned and n_aligned >= 2 * sublane:
        tile_m = max(sublane, (-(-(n_aligned // 2) // sublane)) * sublane)

    num_tiles = -(-N // tile_m)

    # Only the (tiny) target vector is padded; the (N, V) logits are streamed un-padded and
    # the kernel select-masks the out-of-bounds tail rows of the final tile.
    n_pad = num_tiles * tile_m
    if n_pad != N:
        yv = jnp.pad(yv, (0, n_pad - N), constant_values=pad)
    y2 = yv.reshape(-1, 1)

    kernel = functools.partial(_label_smoothing_kernel, ls=ls, vocab_size=V, pad=pad,
                               n_rows=N)

    partials = pl.pallas_call(
        kernel,
        out_shape=jax.ShapeDtypeStruct((num_tiles, 8, 128), jnp.float32),
        grid_spec=pltpu.PrefetchScalarGridSpec(
            num_scalar_prefetch=0,
            grid=(num_tiles,),
            in_specs=[
                pl.BlockSpec((tile_m, 1), lambda i: (i, 0)),
                pl.BlockSpec((tile_m, V), lambda i: (i, 0)),
            ],
            out_specs=pl.BlockSpec((1, 8, 128), lambda i: (i, 0, 0)),
        ),
        compiler_params=pltpu.CompilerParams(
            dimension_semantics=("parallel",),   # independent per-tile partials -> megacore OK
            vmem_limit_bytes=vmem_limit_bytes,
        ),
    )(y2, x)

    # Each tile broadcast its partial into its whole (8, 128) block; take one lane per tile.
    return jnp.sum(partials[:, 0, 0])


def _reference(out, y, *, ls, tgt_vocab_size, pad):
    V = tgt_vocab_size
    out2 = out.reshape(-1, V).astype(jnp.float32)
    y2 = y.reshape(-1).astype(jnp.int32)
    logp = jax.nn.log_softmax(out2, axis=-1)
    col = jnp.arange(V)[None, :]
    fill = ls / (V - 2)
    t = jnp.where(col == y2[:, None], 1.0 - ls, fill)
    t = jnp.where(col == pad, 0.0, t)
    t = jnp.where(y2[:, None] == pad, 0.0, t)
    safe_t = jnp.where(t > 0, t, 1.0)
    return jnp.sum(jnp.where(t > 0, t * (jnp.log(safe_t) - logp), 0.0))


if __name__ == "__main__":
    # Deterministic config (mirrors LabelSmoothing.__init__ fields).
    ls = 0.1
    tgt_vocab_size = 128
    pad = 0

    key = jax.random.PRNGKey(0)
    k1, k2, k3, k4 = jax.random.split(key, 4)

    # Case 1: batch=2, seq=8 logits; a couple of targets set to pad to exercise masking.
    out_a = jax.random.normal(k1, (2, 8, tgt_vocab_size), dtype=jnp.float32)
    y_a = jax.random.randint(k2, (2, 8), 0, tgt_vocab_size, dtype=jnp.int32)
    y_a = y_a.at[0, 0].set(pad).at[1, 3].set(pad)
    loss_a = jax.block_until_ready(
        label_smoothing_loss(out_a, y_a, ls=ls, tgt_vocab_size=tgt_vocab_size, pad=pad))
    ref_a = _reference(out_a, y_a, ls=ls, tgt_vocab_size=tgt_vocab_size, pad=pad)
    assert jnp.allclose(loss_a, ref_a, rtol=1e-5, atol=1e-4), (loss_a, ref_a)

    # Case 2: row count not divisible by the tile -> exercises the in-kernel tail masking
    # that replaced the wrapper-side jnp.pad of the logits.
    out_b = jax.random.normal(k3, (2, 7, tgt_vocab_size), dtype=jnp.float32)
    y_b = jax.random.randint(k4, (2, 7), 0, tgt_vocab_size, dtype=jnp.int32)
    loss_b = jax.block_until_ready(
        label_smoothing_loss(out_b, y_b, ls=ls, tgt_vocab_size=tgt_vocab_size, pad=pad))
    ref_b = _reference(out_b, y_b, ls=ls, tgt_vocab_size=tgt_vocab_size, pad=pad)
    assert jnp.allclose(loss_b, ref_b, rtol=1e-5, atol=1e-4), (loss_b, ref_b)

    print("KERNEL_OK")
</pallas_src>

<mosaic_0001>
module attributes {stable_mosaic.version = 11 : i64} {
  func.func @_label_smoothing_kernel(%arg0: i32, %arg1: memref<8x1xi32, #tpu.memory_space<vmem>>, %arg2: memref<8x128xf32, #tpu.memory_space<vmem>>, %arg3: memref<1x8x128xf32, #tpu.memory_space<vmem>>) attributes {dimension_semantics = [#tpu.dimension_semantics<parallel>], iteration_bounds = array<i64: 2>, scalar_prefetch = 0 : i64, scratch_operands = 0 : i64, tpu.core_type = #tpu.core_type<tc>, window_params = [{transform_indices = @transform_0, window_bounds = array<i64: 8, 1>}, {transform_indices = @transform_1, window_bounds = array<i64: 8, 128>}, {transform_indices = @transform_2, window_bounds = array<i64: 1, 8, 128>}]} {
    %c0 = arith.constant 0 : index
    %c0_0 = arith.constant 0 : index
    %0 = vector.load %arg2[%c0, %c0_0] : memref<8x128xf32, #tpu.memory_space<vmem>>, vector<8x128xf32>
    %c0_1 = arith.constant 0 : index
    %c0_2 = arith.constant 0 : index
    %1 = vector.load %arg1[%c0_1, %c0_2] : memref<8x1xi32, #tpu.memory_space<vmem>>, vector<8x1xi32>
    %cst = arith.constant dense<0xFF800000> : vector<8xf32>
    %2 = vector.multi_reduction <maximumf>, %0, %cst [1] : vector<8x128xf32> to vector<8xf32>
    %3 = vector.shape_cast %2 : vector<8xf32> to vector<8x1xf32>
    %4 = vector.broadcast %3 : vector<8x1xf32> to vector<8x128xf32>
    %5 = arith.subf %0, %4 : vector<8x128xf32>
    %6 = math.exp %5 : vector<8x128xf32>
    %cst_3 = arith.constant dense<0.000000e+00> : vector<8xf32>
    %7 = vector.multi_reduction <add>, %6, %cst_3 [1] : vector<8x128xf32> to vector<8xf32>
    %8 = vector.shape_cast %7 : vector<8xf32> to vector<8x1xf32>
    %9 = math.log %8 : vector<8x1xf32>
    %10 = arith.addf %9, %3 : vector<8x1xf32>
    %11 = tpu.iota {dimensions = array<i32: 1>} : vector<8x128xi32>
    %12 = vector.broadcast %1 : vector<8x1xi32> to vector<8x128xi32>
    %13 = arith.cmpi eq, %11, %12 : vector<8x128xi32>
    %cst_4 = arith.constant 0.899999976 : f32
    %14 = vector.broadcast %cst_4 : f32 to vector<8x128xf32>
    %15 = arith.mulf %14, %0 : vector<8x128xf32>
    %c0_i32 = arith.constant 0 : i32
    %16 = vector.broadcast %c0_i32 : i32 to vector<8x128xi32>
    %17 = arith.cmpi eq, %11, %16 : vector<8x128xi32>
    %cst_5 = arith.constant 7.93650805E-4 : f32
    %18 = vector.broadcast %cst_5 : f32 to vector<8x128xf32>
    %19 = arith.mulf %18, %0 : vector<8x128xf32>
    %cst_6 = arith.constant 0.000000e+00 : f32
    %20 = vector.broadcast %cst_6 : f32 to vector<8x128xf32>
    %21 = arith.select %17, %20, %19 : vector<8x128xi1>, vector<8x128xf32>
    %22 = arith.select %13, %15, %21 : vector<8x128xi1>, vector<8x128xf32>
    %cst_7 = arith.constant dense<0.000000e+00> : vector<8xf32>
    %23 = vector.multi_reduction <add>, %22, %cst_7 [1] : vector<8x128xf32> to vector<8xf32>
    %24 = vector.shape_cast %23 : vector<8xf32> to vector<8x1xf32>
    %25 = arith.subf %24, %10 : vector<8x1xf32>
    %cst_8 = arith.constant -0.808711171 : f32
    %26 = vector.broadcast %cst_8 : f32 to vector<8x1xf32>
    %27 = arith.subf %26, %25 : vector<8x1xf32>
    %c8_i32 = arith.constant 8 : i32
    %28 = arith.muli %arg0, %c8_i32 : i32
    %29 = tpu.iota {dimensions = array<i32: 0>} : vector<8x1xi32>
    %30 = vector.broadcast %28 : i32 to vector<8x1xi32>
    %31 = arith.addi %30, %29 : vector<8x1xi32>
    %c0_i32_9 = arith.constant 0 : i32
    %32 = vector.broadcast %c0_i32_9 : i32 to vector<8x1xi32>
    %33 = arith.cmpi ne, %1, %32 : vector<8x1xi32>
    %c16_i32 = arith.constant 16 : i32
    %34 = vector.broadcast %c16_i32 : i32 to vector<8x1xi32>
    %35 = arith.cmpi slt, %31, %34 : vector<8x1xi32>
    %36 = arith.andi %33, %35 : vector<8x1xi1>
    %cst_10 = arith.constant 0.000000e+00 : f32
    %37 = vector.broadcast %cst_10 : f32 to vector<8x1xf32>
    %38 = arith.select %36, %27, %37 : vector<8x1xi1>, vector<8x1xf32>
    %39 = vector.shape_cast %38 : vector<8x1xf32> to vector<1x8x1xf32>
    %cst_11 = arith.constant dense<0.000000e+00> : vector<1xf32>
    %40 = vector.multi_reduction <add>, %39, %cst_11 [1, 2] : vector<1x8x1xf32> to vector<1xf32>
    %41 = vector.shape_cast %40 : vector<1xf32> to vector<1x1x1xf32>
    %42 = vector.extract %41[0, 0, 0] : f32 from vector<1x1x1xf32>
    %43 = vector.broadcast %42 : f32 to vector<1x8x128xf32>
    %c0_12 = arith.constant 0 : index
    %c0_13 = arith.constant 0 : index
    %c0_14 = arith.constant 0 : index
    %44 = vector.load %arg3[%c0_12, %c0_13, %c0_14] : memref<1x8x128xf32, #tpu.memory_space<vmem>>, vector<1x8x128xf32>
    tpu.vector_store %arg3[%c0_12, %c0_13, %c0_14], %43 {strides = array<i32>} : memref<1x8x128xf32, #tpu.memory_space<vmem>>, vector<1x8x128xf32>,
    return
  }
  func.func @transform_0(%arg0: i32) -> (i32, i32) {
    %c0_i32 = arith.constant 0 : i32
    %c0_i32_0 = arith.constant 0 : i32
    return %arg0, %c0_i32 : i32, i32
  }
  func.func @transform_1(%arg0: i32) -> (i32, i32) {
    %c0_i32 = arith.constant 0 : i32
    %c0_i32_0 = arith.constant 0 : i32
    return %arg0, %c0_i32 : i32, i32
  }
  func.func @transform_2(%arg0: i32) -> (i32, i32, i32) {
    %c0_i32 = arith.constant 0 : i32
    %c0_i32_0 = arith.constant 0 : i32
    %c0_i32_1 = arith.constant 0 : i32
    return %arg0, %c0_i32, %c0_i32_0 : i32, i32, i32
  }
}

</mosaic_0001>

<llo_original>
// kernel: tpu_custom_call.1
$region0: #{tpu_custom_call.1}
  #allocation0 [shape = 'u32[]', space=smem, size = 0x4, offset = 0x4, fixed_abs, tag = 'smem constant byte address 0x4 - core index']
  #allocation1 [shape = 'u32[144,128]{1,0:T(1,128)}', space=vmem, size = 0x12000, scoped, tag = 'internal scratch']
  %s0 = inlined_call_operand.vmem [shape: s32[16,1], index: 0, kind: input, shape index: {}]
  %s1 = inlined_call_operand.vmem [shape: f32[16,128], index: 1, kind: input, shape index: {}]
  %s2 = inlined_call_operand.hbm [shape: f32[2,8,128], index: 2, kind: output, shape index: {}]
  %s3 = sld [smem:[#allocation0]]
  $region41: #{tpu_custom_call.1} parent=0
    _
  %s5 = ssub.s32 1, %s3
  %s6 = scalar_select 0, %s5, %s3
  $region1: #{tpu_custom_call.1} parent=0
    #allocation2 [shape = 'u8[8192]{0}', space=vmem, size = 0x2000, scoped, tag = 'output window, operand 0']
    #allocation3 [shape = 's32[2]{0}', space=sflag, size = 0x8, scoped, tag = 'scoped memory for tpu_custom_call.1']
    %7 = vsyncpa [#allocation3], 0
    %s8 = scalar_lea.sflag [#allocation3], 1
    %9 = vsyncpa %s8, 0
    loop: start=0, step=1, limit=4
    $region2: #{tpu_custom_call.1} parent=1 // loop_pre_header
      _
    $region3: #{tpu_custom_call.1} parent=1 // loop_header
      %s11 = sphi 0, %s15
      %p12 = scmp.ge.s32.totalorder %s11, 4
      %s21 = sphi 0, %s23
      %s24 = sphi 0, %s21
      %s25 = sphi 0, %s24
      %s41 = sphi 0, %s25
      %s47 = sphi 0, %s49
      %s50 = sphi 0, %s47
      %s51 = sphi 0, %s50
      %s67 = sphi 0, %s51
      %s73 = sphi 0, %s75
      %s76 = sphi 0, %s73
      %s77 = sphi 0, %s76
      %s93 = sphi 0, %s77
    $region4: #{tpu_custom_call.1} parent=1 // loop_header_branch
      %14 = sbr.rel (%p12) target = $region8
    $region5: #{tpu_custom_call.1} parent=1 // loop_body
      %s16 = ssub.s32 %s11, 1
      %s17 = ssub.s32 %s11, 2
      %s18 = sadd.s32 %s11, 1
      %s19 = ssub.s32 %s11, %s18
      %p20 = scmp.eq.s32.totalorder %s19, 0
      %s22 = sadd.s32 %s21, 1
      %s23 = scalar_select %p20, %s21, %s22
      %p26 = pneg %p20
      %p27 = scmp.eq.s32.totalorder %s11, 1
      %p28 = por %p26, %p27
      %p29 = scmp.ne.s32.totalorder %s21, %s24
      %p30 = scmp.eq.s32.totalorder %s11, 0
      %p31 = por %p29, %p30
      %p32 = scmp.ne.s32.totalorder %s21, %s24
      %p33 = scmp.eq.s32.totalorder %s16, 1
      %p34 = por %p32, %p33
      %p35 = scmp.ne.s32.totalorder %s24, %s25
      %p36 = scmp.eq.s32.totalorder %s16, 0
      %p37 = por %p35, %p36
      %p38 = scmp.ne.s32.totalorder %s24, %s25
      %p39 = scmp.eq.s32.totalorder %s17, 1
      %p40 = por %p38, %p39
      %p42 = scmp.ne.s32.totalorder %s25, %s41
      %p43 = scmp.eq.s32.totalorder %s17, 0
      %p44 = por %p42, %p43
      %s45 = ssub.s32 %s11, %s18
      %p46 = scmp.eq.s32.totalorder %s45, 0
      %s48 = sadd.s32 %s47, 1
      %s49 = scalar_select %p46, %s47, %s48
      %p52 = pneg %p46
      %p53 = scmp.eq.s32.totalorder %s11, 1
      %p54 = por %p52, %p53
      %p55 = scmp.ne.s32.totalorder %s47, %s50
      %p56 = scmp.eq.s32.totalorder %s11, 0
      %p57 = por %p55, %p56
      %p58 = scmp.ne.s32.totalorder %s47, %s50
      %p59 = scmp.eq.s32.totalorder %s16, 1
      %p60 = por %p58, %p59
      %p61 = scmp.ne.s32.totalorder %s50, %s51
      %p62 = scmp.eq.s32.totalorder %s16, 0
      %p63 = por %p61, %p62
      %p64 = scmp.ne.s32.totalorder %s50, %s51
      %p65 = scmp.eq.s32.totalorder %s17, 1
      %p66 = por %p64, %p65
      %p68 = scmp.ne.s32.totalorder %s51, %s67
      %p69 = scmp.eq.s32.totalorder %s17, 0
      %p70 = por %p68, %p69
      %s71 = ssub.s32 %s11, %s18
      %p72 = scmp.eq.s32.totalorder %s71, 0
      %s74 = sadd.s32 %s73, 1
      %s75 = scalar_select %p72, %s73, %s74
      %p78 = pneg %p72
      %p79 = scmp.eq.s32.totalorder %s11, 1
      %p80 = por %p78, %p79
      %p81 = scmp.ne.s32.totalorder %s73, %s76
      %p82 = scmp.eq.s32.totalorder %s11, 0
      %p83 = por %p81, %p82
      %p84 = scmp.ne.s32.totalorder %s73, %s76
      %p85 = scmp.eq.s32.totalorder %s16, 1
      %p86 = por %p84, %p85
      %p87 = scmp.ne.s32.totalorder %s76, %s77
      %p88 = scmp.eq.s32.totalorder %s16, 0
      %p89 = por %p87, %p88
      %p90 = scmp.ne.s32.totalorder %s76, %s77
      %p91 = scmp.eq.s32.totalorder %s17, 1
      %p92 = por %p90, %p91
      %p94 = scmp.ne.s32.totalorder %s77, %s93
      %p95 = scmp.eq.s32.totalorder %s17, 0
      %p96 = por %p94, %p95
      %p97 = scmp.le.s32.totalorder 1, %s11
      %p98 = scmp.lt.s32.totalorder %s11, 3
      %p99 = pnand %p97, %p98
      %p100 = pneg %p99
      // Predicated region
      $region9: #{tpu_custom_call.1} parent=5 // pred_check
        _
      $region10: #{tpu_custom_call.1} parent=5 // pred_check_branch
        %102 = sbr.rel (%p99) target = $region12
      $region11: #{tpu_custom_call.1} parent=5 // pred_region
        %s103 = ssub.s32 %s11, 1
      $region12: #{tpu_custom_call.1} parent=5 // pred_fallthru
        _
      %p104 = scmp.lt.s32.totalorder %s11, 2
      // Predicated region
      $region13: #{tpu_custom_call.1} parent=5 // pred_check
        %p105 = pneg %p104
      $region14: #{tpu_custom_call.1} parent=5 // pred_check_branch
        %107 = sbr.rel (%p105) target = $region16
      $region15: #{tpu_custom_call.1} parent=5 // pred_region
        // Predicated region
        $region17: #{tpu_custom_call.1} parent=15 // pred_check
          %p108 = pneg %p31
        $region18: #{tpu_custom_call.1} parent=15 // pred_check_branch
          %110 = sbr.rel (%p108) target = $region20
        $region19: #{tpu_custom_call.1} parent=15 // pred_region
          %p111 = scmp.lt.s32.totalorder %s11, 1
          %s112 = scalar_select %p111, %s11, 1
          %s113 = smul.addr %s112, 8
          %s114 = scalar_lea.vmem %s0, %s113
        $region20: #{tpu_custom_call.1} parent=15 // pred_fallthru
          _
        // Predicated region
        $region21: #{tpu_custom_call.1} parent=15 // pred_check
          %p115 = pneg %p57
        $region22: #{tpu_custom_call.1} parent=15 // pred_check_branch
          %117 = sbr.rel (%p115) target = $region24
        $region23: #{tpu_custom_call.1} parent=15 // pred_region
          %p118 = scmp.lt.s32.totalorder %s11, 1
          %s119 = scalar_select %p118, %s11, 1
          %s120 = smul.addr %s119, 8
          %s121 = scalar_lea.vmem %s1, %s120
        $region24: #{tpu_custom_call.1} parent=15 // pred_fallthru
          _
      $region16: #{tpu_custom_call.1} parent=5 // pred_fallthru
        _
      %p122 = scmp.le.s32.totalorder 1, %s11
      %p123 = scmp.lt.s32.totalorder %s11, 3
      %p124 = pnand %p122, %p123
      %p125 = pneg %p124
      // Predicated region
      $region25: #{tpu_custom_call.1} parent=5 // pred_check
        _
      $region26: #{tpu_custom_call.1} parent=5 // pred_check_branch
        %127 = sbr.rel (%p124) target = $region28
      $region27: #{tpu_custom_call.1} parent=5 // pred_region
        %s128 = ssub.s32 %s11, 1
        %p129 = scmp.lt.s32.totalorder %s16, 1
        %s130 = scalar_select %p129, %s16, 1
        %s131 = smul.addr %s130, 8
        %s132 = scalar_lea.vmem %s0, %s131
        %p133 = pneg %p37
        %p134 = pneg %p34
        %p135 = scmp.lt.s32.totalorder %s16, 1
        %s136 = scalar_select %p135, %s16, 1
        %s137 = smul.addr %s136, 8
        %s138 = scalar_lea.vmem %s1, %s137
        %p139 = pneg %p63
        %p140 = pneg %p60
        %p141 = pneg %p89
        %p142 = pneg %p86
        %s143 = sand.u32 %s76, 1
        %s144 = scalar_lea.sflag [#allocation3], %s143
        %s145 = sand.u32 %s76, 1
        %s146 = smul.addr %s145, 8
        %s147 = scalar_lea.vmem [#allocation2], %s146
        %p148 = scmp.lt.s32.totalorder %s16, 1
        %s149 = scalar_select %p148, %s16, 1
        %s150 = smul.addr %s149, 8
        %s151 = scalar_lea.vmem %s0, %s150
        %p152 = scmp.lt.s32.totalorder %s16, 1
        %s153 = scalar_select %p152, %s16, 1
        %s154 = smul.addr %s153, 8
        %s155 = scalar_lea.vmem %s1, %s154
        %v156 = vld [vmem:[%s155] sm:$0xff]
        %v157 = vld [vmem:[%s151] sm:$0xff]
        %158 = vmax.xlane.f32.xlu0 %v156
        %v159 = vpop.xlane.xlu0 %158
        %v160 = vsub.f32 %v156, %v159
        %v161 = vmul.f32 %v160, 1.442695
        %v162 = vpow.pop %v161
        %163 = vadd.xlane.f32.xlu0 %v162
        %v164 = vpop.xlane.xlu0 %163
        %v165 = vlog2.pop %v164
        %v166 = vmul.f32 %v165, 0.6931472
        %v167 = vadd.f32 %v166, %v159
        %v168 = vlaneseq
        %v169 = vand.u32 %v168, 127
        %170 = vset.pattern.permute.xlu0 0
        %171 = vperm.xlu0 %170, %v157
        %v172 = vpop.permute.xlu0 %171
        %vm173 = vcmp.eq.s32.totalorder %v169, %v172
        %v174 = vmul.f32 %v156, 0.9
        %vm175 = vcmp.eq.s32.totalorder %v169, 0
        %v176 = vmul.f32 %v156, 0.0007936508
        %v177 = vsel %vm175, 0.0, %v176
        %v178 = vsel %vm173, %v174, %v177
        %179 = vadd.xlane.f32.xlu0 %v178
        %v180 = vpop.xlane.xlu0 %179
        %v181 = vsub.f32 %v180, %v167
        %v182 = vsub.f32 -0.8087112, %v181
        %s183 = smul.u32 %s16, 8
        %v184 = vlaneseq
        %v185 = vshrl.u32 %v184, 7
        %v186 = vstv %s183
        %v187 = vadd.s32 %v186, %v185
        %vm188 = vcmp.ne.s32.totalorder %v157, 0
        %vm189 = vcmp.lt.s32.totalorder %v187, 16
        %vm190 = vmand %vm188, %vm189
        %v191 = vsel %vm190, %v182, 0.0
        %vm192 = vcmask 7168
        %v193 = vsel %vm192, %v191, 0.0
        %194 = vadd.xlane.f32.xlu0 %v193
        %v195 = vpop.xlane.xlu0 %194
        %v196 = vrot.slane %v195, 4
        %v197 = vadd.f32 %v195, %v196
        %v198 = vrot.slane %v197, 2
        %v199 = vadd.f32 %v197, %v198
        %v200 = vrot.slane %v199, 1
        %v201 = vadd.f32 %v199, %v200
        %s202 = vtos %v201
        %v203 = vstv %s202
        %204 = vst [vmem:[%s147] sm:$0xff] %v203
        %s205 = sand.u32 %s76, 1
        %s206 = scalar_lea.sflag [#allocation3], %s205
        %s207 = sand.u32 %s76, 1
        %s208 = smul.addr %s207, 8
        %s209 = scalar_lea.vmem [#allocation2], %s208
        // Predicated region
        $region29: #{tpu_custom_call.1} parent=27 // pred_check
          %p210 = pneg %p86
        $region30: #{tpu_custom_call.1} parent=27 // pred_check_branch
          %212 = sbr.rel (%p210) target = $region32
        $region31: #{tpu_custom_call.1} parent=27 // pred_region
          %s214 = ssub.s32 128, 128
          %215 = vsyncadd %s206, %s214
          %s216 = smul.addr %s16, 128
          %s217 = scalar_lea.hbm %s2, %s216
          %s219 = sshll.u32 %s209, 4
          %s220 = int_to_ptr.vmem [resolvable:$true] %s219
          %222 = dma.vmem_to_hbm [thread:$0]  %s220, 128, %s217, %s206
        $region32: #{tpu_custom_call.1} parent=27 // pred_fallthru
          _
      $region28: #{tpu_custom_call.1} parent=5 // pred_fallthru
        _
      %p223 = scmp.le.s32.totalorder 2, %s11
      // Predicated region
      $region33: #{tpu_custom_call.1} parent=5 // pred_check
        %p224 = pneg %p223
      $region34: #{tpu_custom_call.1} parent=5 // pred_check_branch
        %226 = sbr.rel (%p224) target = $region36
      $region35: #{tpu_custom_call.1} parent=5 // pred_region
        %s227 = ssub.s32 %s11, 2
        // Predicated region
        $region37: #{tpu_custom_call.1} parent=35 // pred_check
          %p228 = pneg %p92
        $region38: #{tpu_custom_call.1} parent=35 // pred_check_branch
          %230 = sbr.rel (%p228) target = $region40
        $region39: #{tpu_custom_call.1} parent=35 // pred_region
          %s231 = sand.u32 %s77, 1
          %s232 = scalar_lea.sflag [#allocation3], %s231
          %s233 = sand.u32 %s77, 1
          %s234 = smul.addr %s233, 8
          %s235 = scalar_lea.vmem [#allocation2], %s234
          %236 = dma.done %s232, 128
        $region40: #{tpu_custom_call.1} parent=35 // pred_fallthru
          _
      $region36: #{tpu_custom_call.1} parent=5 // pred_fallthru
        _
    $region6: #{tpu_custom_call.1} parent=1 // loop_footer
      %s15 = sadd.s32 1, %s11
    $region7: #{tpu_custom_call.1} parent=1 // loop_footer_branch
      %10 = sbr.rel target = $region3
    $region8: #{tpu_custom_call.1} parent=1 // loop_exit
      _
    %237 = vsyncpa [#allocation3], 1
    %s238 = scalar_lea.sflag [#allocation3], 1
    %239 = vsyncpa %s238, 1

</llo_original>
